<compile_context>
chip_gen: v5e
topology: v5e:2x2
jax: 0.10.0
libtpu: 0.0.40
codegen_flags: <defaults>
</compile_context>

<pallas_src>
import jax
import jax.numpy as jnp
from jax.experimental import pallas as pl
from jax.experimental.pallas import tpu as pltpu


def qnet_kernel(x_ref, w1_ref, b1_ref, w2_ref, b2_ref, o_ref):
    # fc1: (TM, S) @ (S, H) + (1, H), then ReLU.  MXU accumulates in f32.
    h = jnp.dot(x_ref[...], w1_ref[...], preferred_element_type=jnp.float32)
    h = jnp.maximum(h + b1_ref[...], 0.0)
    # fc2: (TM, H) @ (H, A) + (1, A).
    out = jnp.dot(h.astype(w2_ref.dtype), w2_ref[...],
                  preferred_element_type=jnp.float32)
    o_ref[...] = (out + b2_ref[...]).astype(o_ref.dtype)


def _round_up(n, m):
    return ((n + m - 1) // m) * m


def qnet_forward(x, w1, b1, w2, b2, *, tile_m=None):
    """Fused Qnet forward.

    x:  (B, S)      w1: (S, H)   b1: (1, H) or (H,)
                    w2: (H, A)   b2: (1, A) or (A,)
    Returns (B, A).
    """
    batch, state_dim = x.shape
    hidden_dim, action_dim = w2.shape
    assert w1.shape == (state_dim, hidden_dim)
    dt = x.dtype

    b1 = jnp.asarray(b1, dt).reshape(1, hidden_dim)
    b2 = jnp.asarray(b2, dt).reshape(1, action_dim)

    # Tile the batch.  Small batches: one tile (single grid step, least
    # per-step overhead on single-TC chips).  Larger batches: two tiles so
    # the "parallel" axis can shard across v7x's two TensorCores.
    b8 = _round_up(batch, 8)
    if tile_m is None:
        tile_m = _round_up(-(-b8 // 2), 8) if b8 >= 256 else b8
    tile_m = _round_up(max(8, min(int(tile_m), b8)), 8)
    b_pad = _round_up(batch, tile_m)
    grid = (b_pad // tile_m,)

    # Only batch rows ever get padded (and only when needed).
    xp = x if b_pad == batch else jnp.pad(x, ((0, b_pad - batch), (0, 0)))

    out = pl.pallas_call(
        qnet_kernel,
        out_shape=jax.ShapeDtypeStruct((b_pad, action_dim), dt),
        grid=grid,
        in_specs=[
            # x tile: second-minor is a multiple of 8, last dim = full extent.
            pl.BlockSpec((tile_m, state_dim), lambda i: (i, 0)),
            # Weights / biases: full-extent blocks, constant index_map ->
            # resident in VMEM across all grid steps (no re-fetch).
            pl.BlockSpec((state_dim, hidden_dim), lambda i: (0, 0)),
            pl.BlockSpec((1, hidden_dim), lambda i: (0, 0)),
            pl.BlockSpec((hidden_dim, action_dim), lambda i: (0, 0)),
            pl.BlockSpec((1, action_dim), lambda i: (0, 0)),
        ],
        # Narrow (action_dim-wide) HBM output: block last dim = full extent.
        out_specs=pl.BlockSpec((tile_m, action_dim), lambda i: (i, 0)),
        compiler_params=pltpu.CompilerParams(
            dimension_semantics=("parallel",),   # batch tiles are independent
        ),
    )(xp, w1, b1, w2, b2)

    return out if b_pad == batch else out[:batch]


def init_qnet_params(key, state_dim, hidden_dim, action_dim, dtype=jnp.float32):
    """Deterministic init mimicking torch.nn.Linear default:
    U(-1/sqrt(fan_in), 1/sqrt(fan_in)) for both weight and bias."""
    k1, k2, k3, k4 = jax.random.split(key, 4)
    bound1 = 1.0 / (state_dim ** 0.5)
    bound2 = 1.0 / (hidden_dim ** 0.5)
    w1 = jax.random.uniform(k1, (state_dim, hidden_dim), dtype,
                            minval=-bound1, maxval=bound1)
    b1 = jax.random.uniform(k2, (1, hidden_dim), dtype,
                            minval=-bound1, maxval=bound1)
    w2 = jax.random.uniform(k3, (hidden_dim, action_dim), dtype,
                            minval=-bound2, maxval=bound2)
    b2 = jax.random.uniform(k4, (1, action_dim), dtype,
                            minval=-bound2, maxval=bound2)
    return w1, b1, w2, b2


if __name__ == "__main__":
    # Small, forward-consistent shapes: batch=2 states of dim 4 (e.g. CartPole),
    # hidden_dim=32, action_dim=2.
    batch, state_dim, hidden_dim, action_dim = 2, 4, 32, 2

    key = jax.random.PRNGKey(0)
    kx, kp = jax.random.split(key)
    x = jax.random.normal(kx, (batch, state_dim), dtype=jnp.float32)
    w1, b1, w2, b2 = init_qnet_params(kp, state_dim, hidden_dim, action_dim)

    out = jax.block_until_ready(qnet_forward(x, w1, b1, w2, b2))

    # Pure-JAX reference check of the same math.
    ref = jnp.maximum(x @ w1 + b1, 0.0) @ w2 + b2
    assert out.shape == (batch, action_dim)
    assert jnp.allclose(out, ref, atol=1e-5, rtol=1e-5)

    # Also exercise the multi-step batch grid path (replay-buffer sized batch,
    # auto tile_m -> 2 grid steps, row-padded x).
    kx2 = jax.random.fold_in(kx, 1)
    xb = jax.random.normal(kx2, (300, state_dim), dtype=jnp.float32)
    outb = jax.block_until_ready(qnet_forward(xb, w1, b1, w2, b2))
    refb = jnp.maximum(xb @ w1 + b1, 0.0) @ w2 + b2
    assert outb.shape == (300, action_dim)
    assert jnp.allclose(outb, refb, atol=1e-5, rtol=1e-5)

    # And a user-supplied (non-multiple-of-8) tile_m is rounded up safely.
    outc = jax.block_until_ready(qnet_forward(xb, w1, b1, w2, b2, tile_m=100))
    assert jnp.allclose(outc, refb, atol=1e-5, rtol=1e-5)

    print("KERNEL_OK")
</pallas_src>

<mosaic_0001>
module attributes {stable_mosaic.version = 11 : i64} {
  func.func @qnet_kernel(%arg0: i32, %arg1: memref<8x4xf32, #tpu.memory_space<vmem>>, %arg2: memref<4x32xf32, #tpu.memory_space<vmem>>, %arg3: memref<1x32xf32, #tpu.memory_space<vmem>>, %arg4: memref<32x2xf32, #tpu.memory_space<vmem>>, %arg5: memref<1x2xf32, #tpu.memory_space<vmem>>, %arg6: memref<8x2xf32, #tpu.memory_space<vmem>>) attributes {dimension_semantics = [#tpu.dimension_semantics<parallel>], iteration_bounds = array<i64: 1>, scalar_prefetch = 0 : i64, scratch_operands = 0 : i64, tpu.core_type = #tpu.core_type<tc>, window_params = [{transform_indices = @transform_0, window_bounds = array<i64: 8, 4>}, {pipeline_mode = #tpu.pipeline_mode<synchronous>, transform_indices = @transform_1, window_bounds = array<i64: 4, 32>}, {pipeline_mode = #tpu.pipeline_mode<synchronous>, transform_indices = @transform_2, window_bounds = array<i64: 1, 32>}, {pipeline_mode = #tpu.pipeline_mode<synchronous>, transform_indices = @transform_3, window_bounds = array<i64: 32, 2>}, {pipeline_mode = #tpu.pipeline_mode<synchronous>, transform_indices = @transform_4, window_bounds = array<i64: 1, 2>}, {transform_indices = @transform_5, window_bounds = array<i64: 8, 2>}]} {
    %c0 = arith.constant 0 : index
    %c0_0 = arith.constant 0 : index
    %0 = vector.load %arg1[%c0, %c0_0] : memref<8x4xf32, #tpu.memory_space<vmem>>, vector<8x4xf32>
    %c0_1 = arith.constant 0 : index
    %c0_2 = arith.constant 0 : index
    %1 = vector.load %arg2[%c0_1, %c0_2] : memref<4x32xf32, #tpu.memory_space<vmem>>, vector<4x32xf32>
    %cst = arith.constant dense<0.000000e+00> : vector<8x32xf32>
    %2 = tpu.matmul %0, %1, %cst {dimension_numbers = #tpu.dot_dimension_numbers<[1], [0], [0], [1], [0, 0, 1, 1], [], []>} : vector<8x4xf32>, vector<4x32xf32>, vector<8x32xf32> -> vector<8x32xf32>
    %c0_3 = arith.constant 0 : index
    %c0_4 = arith.constant 0 : index
    %3 = vector.load %arg3[%c0_3, %c0_4] : memref<1x32xf32, #tpu.memory_space<vmem>>, vector<1x32xf32>
    %4 = vector.broadcast %3 : vector<1x32xf32> to vector<8x32xf32>
    %5 = arith.addf %2, %4 : vector<8x32xf32>
    %cst_5 = arith.constant 0.000000e+00 : f32
    %6 = vector.broadcast %cst_5 : f32 to vector<8x32xf32>
    %7 = arith.maximumf %5, %6 : vector<8x32xf32>
    %c0_6 = arith.constant 0 : index
    %c0_7 = arith.constant 0 : index
    %8 = vector.load %arg4[%c0_6, %c0_7] : memref<32x2xf32, #tpu.memory_space<vmem>>, vector<32x2xf32>
    %cst_8 = arith.constant dense<0.000000e+00> : vector<8x2xf32>
    %9 = tpu.matmul %7, %8, %cst_8 {dimension_numbers = #tpu.dot_dimension_numbers<[1], [0], [0], [1], [0, 0, 1, 1], [], []>} : vector<8x32xf32>, vector<32x2xf32>, vector<8x2xf32> -> vector<8x2xf32>
    %c0_9 = arith.constant 0 : index
    %c0_10 = arith.constant 0 : index
    %10 = vector.load %arg5[%c0_9, %c0_10] : memref<1x2xf32, #tpu.memory_space<vmem>>, vector<1x2xf32>
    %11 = vector.broadcast %10 : vector<1x2xf32> to vector<8x2xf32>
    %12 = arith.addf %9, %11 : vector<8x2xf32>
    %c0_11 = arith.constant 0 : index
    %c0_12 = arith.constant 0 : index
    %13 = vector.load %arg6[%c0_11, %c0_12] : memref<8x2xf32, #tpu.memory_space<vmem>>, vector<8x2xf32>
    tpu.vector_store %arg6[%c0_11, %c0_12], %12 {strides = array<i32>} : memref<8x2xf32, #tpu.memory_space<vmem>>, vector<8x2xf32>,
    return
  }
  func.func @transform_0(%arg0: i32) -> (i32, i32) {
    %c0_i32 = arith.constant 0 : i32
    %c0_i32_0 = arith.constant 0 : i32
    return %arg0, %c0_i32 : i32, i32
  }
  func.func @transform_1(%arg0: i32) -> (i32, i32) {
    %c0_i32 = arith.constant 0 : i32
    %c0_i32_0 = arith.constant 0 : i32
    %c0_i32_1 = arith.constant 0 : i32
    return %c0_i32, %c0_i32_0 : i32, i32
  }
  func.func @transform_2(%arg0: i32) -> (i32, i32) {
    %c0_i32 = arith.constant 0 : i32
    %c0_i32_0 = arith.constant 0 : i32
    %c0_i32_1 = arith.constant 0 : i32
    return %c0_i32, %c0_i32_0 : i32, i32
  }
  func.func @transform_3(%arg0: i32) -> (i32, i32) {
    %c0_i32 = arith.constant 0 : i32
    %c0_i32_0 = arith.constant 0 : i32
    %c0_i32_1 = arith.constant 0 : i32
    return %c0_i32, %c0_i32_0 : i32, i32
  }
  func.func @transform_4(%arg0: i32) -> (i32, i32) {
    %c0_i32 = arith.constant 0 : i32
    %c0_i32_0 = arith.constant 0 : i32
    %c0_i32_1 = arith.constant 0 : i32
    return %c0_i32, %c0_i32_0 : i32, i32
  }
  func.func @transform_5(%arg0: i32) -> (i32, i32) {
    %c0_i32 = arith.constant 0 : i32
    %c0_i32_0 = arith.constant 0 : i32
    return %arg0, %c0_i32 : i32, i32
  }
}

</mosaic_0001>

<llo_original>
// kernel: tpu_custom_call.1
$region0: #{tpu_custom_call.1}
  #allocation0 [shape = 'u32[]', space=smem, size = 0x4, offset = 0x4, fixed_abs, tag = 'smem constant byte address 0x4 - core index']
  #allocation1 [shape = 'u32[72,128]{1,0:T(1,128)}', space=vmem, size = 0x9000, scoped, tag = 'internal scratch']
  %s0 = inlined_call_operand.vmem [shape: f32[8,4], index: 0, kind: input, shape index: {}]
  %s1 = inlined_call_operand.vmem [shape: f32[4,32], index: 1, kind: input, shape index: {}]
  %s2 = inlined_call_operand.vmem [shape: f32[1,32], index: 2, kind: input, shape index: {}]
  %s3 = inlined_call_operand.vmem [shape: f32[32,2], index: 3, kind: input, shape index: {}]
  %s4 = inlined_call_operand.vmem [shape: f32[1,2], index: 4, kind: input, shape index: {}]
  %s5 = inlined_call_operand.vmem [shape: f32[8,2], index: 5, kind: output, shape index: {}]
  %s6 = sld [smem:[#allocation0]]
  $region30: #{tpu_custom_call.1} parent=0
    _
  %s8 = ssub.s32 1, %s6
  %s9 = scalar_select 0, %s8, %s6
  // Predicated region
  $region2: #{tpu_custom_call.1} parent=0 // pred_check
    _
  $region3: #{tpu_custom_call.1} parent=0 // pred_check_branch
    %11 = sbr.rel (0) target = $region5
  $region4: #{tpu_custom_call.1} parent=0 // pred_region
    _
  $region5: #{tpu_custom_call.1} parent=0 // pred_fallthru
    _
  // Predicated region
  $region6: #{tpu_custom_call.1} parent=0 // pred_check
    _
  $region7: #{tpu_custom_call.1} parent=0 // pred_check_branch
    %13 = sbr.rel (0) target = $region9
  $region8: #{tpu_custom_call.1} parent=0 // pred_region
    _
  $region9: #{tpu_custom_call.1} parent=0 // pred_fallthru
    _
  // Predicated region
  $region10: #{tpu_custom_call.1} parent=0 // pred_check
    _
  $region11: #{tpu_custom_call.1} parent=0 // pred_check_branch
    %15 = sbr.rel (0) target = $region13
  $region12: #{tpu_custom_call.1} parent=0 // pred_region
    _
  $region13: #{tpu_custom_call.1} parent=0 // pred_fallthru
    _
  // Predicated region
  $region14: #{tpu_custom_call.1} parent=0 // pred_check
    _
  $region15: #{tpu_custom_call.1} parent=0 // pred_check_branch
    %17 = sbr.rel (0) target = $region17
  $region16: #{tpu_custom_call.1} parent=0 // pred_region
    _
  $region17: #{tpu_custom_call.1} parent=0 // pred_fallthru
    _
  // Predicated region
  $region18: #{tpu_custom_call.1} parent=0 // pred_check
    _
  $region19: #{tpu_custom_call.1} parent=0 // pred_check_branch
    %19 = sbr.rel (0) target = $region21
  $region20: #{tpu_custom_call.1} parent=0 // pred_region
    _
  $region21: #{tpu_custom_call.1} parent=0 // pred_fallthru
    _
  %v20 = vld [vmem:[%s0] sm:$0xff]
  %v21 = vld [vmem:[%s1] sm:$0xf]
  %v22 = vld [vmem:[%s2] sm:$0x1]
  %v24 = vperm.slane %v22, 0
  %vm26 = vcmask 31744
  %v28 = vsel %vm26, %v20, 0
  %vm30 = vcmask 1043456
  %v32 = vsel %vm30, %v21, 0
  %34 = vmatpush.msra.mxu0 0.0
  %35 = vmatpush.msra.mxu0 0.0
  %36 = vmatpush.msra.mxu0 0.0
  %37 = vmatpush.msra.mxu0 0.0
  %38 = vmatpush.msra.mxu0 0.0
  %39 = vmatpush.msra.mxu0 0.0
  %40 = vmatpush.msra.mxu0 0.0
  %41 = vmatpush.msra.mxu0 0.0
  %42 = vmatpush.msra.mxu0 0.0
  %43 = vmatpush.msra.mxu0 0.0
  %44 = vmatpush.msra.mxu0 0.0
  %45 = vmatpush.msra.mxu0 0.0
  %46 = vmatpush.msra.mxu0 0.0
  %47 = vmatpush.msra.mxu0 0.0
  %48 = vmatpush.msra.mxu0 0.0
  %49 = vmatpush.msra.mxu0 %v32
  %50 = vmatmul.f32.gmra.mxu0 %v28
  %v51 = vpop.f32.mrf.mxu0
  %v52 = vadd.f32 %v24, %v51
  %53 = vdwg.mxu0
  %v54 = vmax.f32 %v52, 0.0
  %v55 = vld [vmem:[%s3] sm:$0xff]
  %v56 = vld [vmem:[%s3 + $0x8] sm:$0xff]
  %v57 = vld [vmem:[%s3 + $0x10] sm:$0xff]
  %v58 = vld [vmem:[%s3 + $0x18] sm:$0xff]
  %v59 = vld [vmem:[%s4] sm:$0x1]
  %v61 = vperm.slane %v59, 0
  %vm63 = vcmask 261120
  %v65 = vsel %vm63, %v54, 0
  %67 = vmatpush.msra.mxu0 0.0
  %68 = vmatpush.msra.mxu0 0.0
  %69 = vmatpush.msra.mxu0 0.0
  %70 = vmatpush.msra.mxu0 0.0
  %71 = vmatpush.msra.mxu0 0.0
  %72 = vmatpush.msra.mxu0 0.0
  %73 = vmatpush.msra.mxu0 0.0
  %74 = vmatpush.msra.mxu0 0.0
  %75 = vmatpush.msra.mxu0 0.0
  %76 = vmatpush.msra.mxu0 0.0
  %77 = vmatpush.msra.mxu0 0.0
  %78 = vmatpush.msra.mxu0 0.0
  %79 = vmatpush.msra.mxu0 %v58
  %80 = vmatpush.msra.mxu0 %v57
  %81 = vmatpush.msra.mxu0 %v56
  %82 = vmatpush.msra.mxu0 %v55
  %83 = vmatmul.f32.gmra.mxu0 %v65
  %v84 = vpop.f32.mrf.mxu0
  %v85 = vadd.f32 %v61, %v84
  %86 = vdwg.mxu0
  %vm87 = vcmask 15360
  %88 = vst.msk [vmem:[%s5] sm:$0xff] %vm87, %v85
  // Predicated region
  $region22: #{tpu_custom_call.1} parent=0 // pred_check
    _
  $region23: #{tpu_custom_call.1} parent=0 // pred_check_branch
    %90 = sbr.rel (0) target = $region25
  $region24: #{tpu_custom_call.1} parent=0 // pred_region
    _
  $region25: #{tpu_custom_call.1} parent=0 // pred_fallthru
    _
  // Predicated region
  $region26: #{tpu_custom_call.1} parent=0 // pred_check
    _
  $region27: #{tpu_custom_call.1} parent=0 // pred_check_branch
    %92 = sbr.rel (0) target = $region29
  $region28: #{tpu_custom_call.1} parent=0 // pred_region
    _
  $region29: #{tpu_custom_call.1} parent=0 // pred_fallthru
    _

</llo_original>
